<compile_context>
chip_gen: v6e
topology: v6e:2x2x1
jax: 0.10.0
libtpu: 0.0.40
codegen_flags: <defaults>
</compile_context>

<pallas_src>
import functools

import jax
import jax.numpy as jnp
from jax.experimental import pallas as pl
from jax.experimental.pallas import tpu as pltpu

LN_EPS = 1e-5


def _round_up(x, m):
    return (x + m - 1) // m * m


# ---------------------------------------------------------------------------
# Kernel
# ---------------------------------------------------------------------------
def _mlp_kernel(x_ref, w1_ref, w2_ref, w3_ref, b12_ref, lnp_ref, o_ref, *,
                out_dim, out_p, compute_dtype):
    b1 = b12_ref[0:1, :]
    b2 = b12_ref[1:2, :]
    b3 = lnp_ref[0:1, :]
    gamma = lnp_ref[1:2, :]
    beta = lnp_ref[2:3, :]

    # --- Linear(in -> hidden) + ReLU (MXU matmul, f32 accumulation) ---
    h = jnp.dot(x_ref[...], w1_ref[...],
                preferred_element_type=jnp.float32) + b1
    # Cast right after the ReLU so any spilled intermediate is half-width.
    h = jnp.maximum(h, 0.0).astype(compute_dtype)

    # --- Linear(hidden -> hidden) + ReLU ---
    h = jnp.dot(h, w2_ref[...], preferred_element_type=jnp.float32) + b2
    h = jnp.maximum(h, 0.0).astype(compute_dtype)

    # --- Linear(hidden -> out) ---
    y = jnp.dot(h, w3_ref[...], preferred_element_type=jnp.float32) + b3

    # --- LayerNorm over the true out_dim (two-pass variance) ---
    # Padded lanes of y are exactly zero (zero-padded w3 columns / b3); the
    # centered values at those lanes are masked so they don't pollute the
    # variance sum.
    inv_n = jnp.float32(1.0 / out_dim)
    mean = jnp.sum(y, axis=-1, keepdims=True) * inv_n
    d = y - mean
    if out_p != out_dim:
        lane = jax.lax.broadcasted_iota(jnp.int32, y.shape, 1)
        d = jnp.where(lane < out_dim, d, 0.0)
    var = jnp.sum(d * d, axis=-1, keepdims=True) * inv_n
    yn = d * jax.lax.rsqrt(var + LN_EPS)
    o_ref[...] = (yn * gamma + beta).astype(o_ref.dtype)


# ---------------------------------------------------------------------------
# One-time parameter preparation (hoisted out of the per-call path)
# ---------------------------------------------------------------------------
def prepare_params(params, *, compute_dtype=jnp.bfloat16):
    """Pad feature dims to 128 lanes, fuse biases / LN params into slabs and
    cast weights to the matmul-input dtype ONCE (cache and reuse per call).

    NOTE: storing weights in bf16 is an intentional quantization of the model
    weights; use compute_dtype=jnp.float32 if exact f32 weights are required.
    """
    in_dim, hidden = params["w1"].shape
    out_dim = params["w3"].shape[1]
    in_p = _round_up(in_dim, 128)
    hid_p = _round_up(hidden, 128)
    out_p = _round_up(out_dim, 128)

    f32 = jnp.float32
    w1 = jnp.zeros((in_p, hid_p), f32).at[:in_dim, :hidden].set(params["w1"])
    w2 = jnp.zeros((hid_p, hid_p), f32).at[:hidden, :hidden].set(params["w2"])
    w3 = jnp.zeros((hid_p, out_p), f32).at[:hidden, :out_dim].set(params["w3"])

    b12 = jnp.zeros((2, hid_p), f32)
    b12 = b12.at[0, :hidden].set(params["b1"].reshape(-1))
    b12 = b12.at[1, :hidden].set(params["b2"].reshape(-1))

    lnp = jnp.zeros((3, out_p), f32)
    lnp = lnp.at[0, :out_dim].set(params["b3"].reshape(-1))
    lnp = lnp.at[1, :out_dim].set(params["gamma"].reshape(-1))
    lnp = lnp.at[2, :out_dim].set(params["beta"].reshape(-1))

    return {
        "w1": w1.astype(compute_dtype),
        "w2": w2.astype(compute_dtype),
        "w3": w3.astype(compute_dtype),
        "b12": b12,
        "lnp": lnp,
        "dims": (in_dim, hidden, out_dim),
        "padded_dims": (in_p, hid_p, out_p),
        "compute_dtype": jnp.dtype(compute_dtype),
    }


# ---------------------------------------------------------------------------
# Forward wrapper
# ---------------------------------------------------------------------------
def czhang_mlp_pallas(x, prep, *, block_b=256, single_buffer_weights=True):
    """x: (B, in_dim) float32.  prep: output of prepare_params()."""
    B, in_dim = x.shape
    in_dim_p, hidden, out_dim = prep["dims"]
    assert in_dim == in_dim_p, "x feature dim does not match prepared params"
    in_p, hid_p, out_p = prep["padded_dims"]
    compute_dtype = prep["compute_dtype"]

    # Batch tile (sweep per generation: 256-512 v6e, 256-384 v7x, 128-256 v5e).
    bb = min(block_b, _round_up(B, 8))
    b_p = _round_up(B, bb)

    # Pad and cast x to the compute dtype (half-size x DMA / VMEM when bf16).
    xp = jnp.pad(x.astype(compute_dtype), ((0, b_p - B), (0, in_p - in_dim)))

    kernel = functools.partial(_mlp_kernel, out_dim=out_dim, out_p=out_p,
                               compute_dtype=compute_dtype)

    tiled = lambda i: (i, 0)   # x / out: tiled along batch
    const = lambda i: (0, 0)   # weights / biases: VMEM-resident across tiles

    w_itemsize = jnp.dtype(compute_dtype).itemsize

    def vmem_budget(single_buffer):
        wbufs = 1 if single_buffer else 2
        weight_bytes = (in_p * hid_p + hid_p * hid_p + hid_p * out_p) * w_itemsize
        small_bytes = (8 * hid_p + 8 * out_p) * 4          # sublane-padded slabs
        io_bytes = 2 * bb * in_p * w_itemsize + 2 * bb * out_p * 4
        interm_bytes = 2 * bb * hid_p * 4 + bb * out_p * 4  # f32 intermediates
        need = wbufs * (weight_bytes + small_bytes) + io_bytes + interm_bytes
        need = max(need + (4 << 20), 32 << 20)             # headroom / floor
        try:
            cap = int(pltpu.get_tpu_info().vmem_capacity_bytes)
        except Exception:
            cap = 64 << 20                                  # v7x worst case
        return min(need, int(cap * 0.9))

    flops = 2 * b_p * (in_p * hid_p + hid_p * hid_p + hid_p * out_p)
    bytes_accessed = int(
        xp.size * xp.dtype.itemsize
        + sum(int(prep[k].size) * prep[k].dtype.itemsize
              for k in ("w1", "w2", "w3", "b12", "lnp"))
        + b_p * out_p * 4)
    cost = pl.CostEstimate(flops=flops, transcendentals=b_p,
                           bytes_accessed=bytes_accessed)

    def run(single_buffer):
        if single_buffer:
            wspec = lambda shape: pl.BlockSpec(shape, const,
                                               pipeline_mode=pl.Buffered(1))
        else:
            wspec = lambda shape: pl.BlockSpec(shape, const)
        return pl.pallas_call(
            kernel,
            out_shape=jax.ShapeDtypeStruct((b_p, out_p), jnp.float32),
            grid=(b_p // bb,),
            in_specs=[
                pl.BlockSpec((bb, in_p), tiled),  # x (batch-tiled)
                wspec((in_p, hid_p)),             # w1
                wspec((hid_p, hid_p)),            # w2
                wspec((hid_p, out_p)),            # w3
                wspec((2, hid_p)),                # [b1; b2]
                wspec((3, out_p)),                # [b3; gamma; beta]
            ],
            out_specs=pl.BlockSpec((bb, out_p), tiled),
            compiler_params=pltpu.CompilerParams(
                dimension_semantics=("parallel",),  # shard batch tiles on v7x
                vmem_limit_bytes=vmem_budget(single_buffer)),
            cost_estimate=cost,
        )(xp, prep["w1"], prep["w2"], prep["w3"], prep["b12"], prep["lnp"])

    if single_buffer_weights:
        try:
            out = run(True)
        except Exception:
            # Fallback if this JAX build rejects Buffered(1) on input specs.
            out = run(False)
    else:
        out = run(False)

    return out[:B, :out_dim]


# ---------------------------------------------------------------------------
# Init + reference + self-test
# ---------------------------------------------------------------------------
def init_params(key, in_dim, out_dim, hidden_size):
    """PyTorch-default-like Linear init (uniform +-1/sqrt(fan_in)); weights
    stored transposed vs PyTorch, i.e. (in, out).  LayerNorm gamma=1, beta=0."""
    ks = jax.random.split(key, 6)

    def linear(kw, kb, fan_in, fan_out):
        bound = 1.0 / jnp.sqrt(jnp.float32(fan_in))
        w = jax.random.uniform(kw, (fan_in, fan_out), jnp.float32, -bound, bound)
        b = jax.random.uniform(kb, (fan_out,), jnp.float32, -bound, bound)
        return w, b

    w1, b1 = linear(ks[0], ks[1], in_dim, hidden_size)
    w2, b2 = linear(ks[2], ks[3], hidden_size, hidden_size)
    w3, b3 = linear(ks[4], ks[5], hidden_size, out_dim)
    return {
        "w1": w1, "b1": b1,
        "w2": w2, "b2": b2,
        "w3": w3, "b3": b3,
        "gamma": jnp.ones((out_dim,), jnp.float32),
        "beta": jnp.zeros((out_dim,), jnp.float32),
    }


def _reference(x, p):
    h = jnp.maximum(x @ p["w1"] + p["b1"], 0.0)
    h = jnp.maximum(h @ p["w2"] + p["b2"], 0.0)
    y = h @ p["w3"] + p["b3"]
    mean = y.mean(axis=-1, keepdims=True)
    var = ((y - mean) ** 2).mean(axis=-1, keepdims=True)
    return (y - mean) / jnp.sqrt(var + LN_EPS) * p["gamma"] + p["beta"]


if __name__ == "__main__":
    B, in_dim, hidden, out_dim = 8, 32, 64, 16
    key = jax.random.PRNGKey(0)
    kx, kp = jax.random.split(key)
    x = jax.random.normal(kx, (B, in_dim), jnp.float32)
    params = init_params(kp, in_dim, out_dim, hidden)

    ref = _reference(x, params)

    # float32 path: test-only tight numerical check vs the PyTorch-equivalent
    # reference (production should use the bf16 matmul-input path below).
    prep_f32 = prepare_params(params, compute_dtype=jnp.float32)
    out_f32 = czhang_mlp_pallas(x, prep_f32)
    jax.block_until_ready(out_f32)
    assert out_f32.shape == (B, out_dim)
    assert jnp.allclose(out_f32, ref, atol=1e-4, rtol=1e-4)

    # bf16 matmul-input fast path (MXU-native on v5e/v6e/v7x).
    prep_bf16 = prepare_params(params, compute_dtype=jnp.bfloat16)
    out_bf16 = czhang_mlp_pallas(x, prep_bf16)
    jax.block_until_ready(out_bf16)
    assert out_bf16.shape == (B, out_dim)
    assert jnp.allclose(out_bf16, ref, atol=5e-2, rtol=5e-2)

    print("KERNEL_OK")
</pallas_src>

<mosaic_0001>
module attributes {stable_mosaic.version = 11 : i64} {
  func.func @_mlp_kernel(%arg0: i32, %arg1: memref<8x128xf32, #tpu.memory_space<vmem>>, %arg2: memref<128x128xf32, #tpu.memory_space<vmem>>, %arg3: memref<128x128xf32, #tpu.memory_space<vmem>>, %arg4: memref<128x128xf32, #tpu.memory_space<vmem>>, %arg5: memref<2x128xf32, #tpu.memory_space<vmem>>, %arg6: memref<3x128xf32, #tpu.memory_space<vmem>>, %arg7: memref<8x128xf32, #tpu.memory_space<vmem>>) attributes {dimension_semantics = [#tpu.dimension_semantics<parallel>], iteration_bounds = array<i64: 1>, scalar_prefetch = 0 : i64, scratch_operands = 0 : i64, tpu.core_type = #tpu.core_type<tc>, window_params = [{transform_indices = @transform_0, window_bounds = array<i64: 8, 128>}, {pipeline_mode = #tpu.pipeline_mode<synchronous>, transform_indices = @transform_1, window_bounds = array<i64: 128, 128>}, {pipeline_mode = #tpu.pipeline_mode<synchronous>, transform_indices = @transform_2, window_bounds = array<i64: 128, 128>}, {pipeline_mode = #tpu.pipeline_mode<synchronous>, transform_indices = @transform_3, window_bounds = array<i64: 128, 128>}, {pipeline_mode = #tpu.pipeline_mode<synchronous>, transform_indices = @transform_4, window_bounds = array<i64: 2, 128>}, {pipeline_mode = #tpu.pipeline_mode<synchronous>, transform_indices = @transform_5, window_bounds = array<i64: 3, 128>}, {transform_indices = @transform_6, window_bounds = array<i64: 8, 128>}]} {
    %c0 = arith.constant 0 : index
    %c0_0 = arith.constant 0 : index
    %0 = vector.load %arg5[%c0, %c0_0] : memref<2x128xf32, #tpu.memory_space<vmem>>, vector<1x128xf32>
    %c1 = arith.constant 1 : index
    %c0_1 = arith.constant 0 : index
    %1 = vector.load %arg5[%c1, %c0_1] : memref<2x128xf32, #tpu.memory_space<vmem>>, vector<1x128xf32>
    %c0_2 = arith.constant 0 : index
    %c0_3 = arith.constant 0 : index
    %2 = vector.load %arg6[%c0_2, %c0_3] : memref<3x128xf32, #tpu.memory_space<vmem>>, vector<1x128xf32>
    %c1_4 = arith.constant 1 : index
    %c0_5 = arith.constant 0 : index
    %3 = vector.load %arg6[%c1_4, %c0_5] : memref<3x128xf32, #tpu.memory_space<vmem>>, vector<1x128xf32>
    %c2 = arith.constant 2 : index
    %c0_6 = arith.constant 0 : index
    %4 = vector.load %arg6[%c2, %c0_6] : memref<3x128xf32, #tpu.memory_space<vmem>>, vector<1x128xf32>
    %c0_7 = arith.constant 0 : index
    %c0_8 = arith.constant 0 : index
    %5 = vector.load %arg1[%c0_7, %c0_8] : memref<8x128xf32, #tpu.memory_space<vmem>>, vector<8x128xf32>
    %c0_9 = arith.constant 0 : index
    %c0_10 = arith.constant 0 : index
    %6 = vector.load %arg2[%c0_9, %c0_10] : memref<128x128xf32, #tpu.memory_space<vmem>>, vector<128x128xf32>
    %cst = arith.constant dense<0.000000e+00> : vector<8x128xf32>
    %7 = tpu.matmul %5, %6, %cst {dimension_numbers = #tpu.dot_dimension_numbers<[1], [0], [0], [1], [0, 0, 1, 1], [], []>} : vector<8x128xf32>, vector<128x128xf32>, vector<8x128xf32> -> vector<8x128xf32>
    %8 = vector.broadcast %0 : vector<1x128xf32> to vector<8x128xf32>
    %9 = arith.addf %7, %8 : vector<8x128xf32>
    %cst_11 = arith.constant 0.000000e+00 : f32
    %10 = vector.broadcast %cst_11 : f32 to vector<8x128xf32>
    %11 = arith.maximumf %9, %10 : vector<8x128xf32>
    %c0_12 = arith.constant 0 : index
    %c0_13 = arith.constant 0 : index
    %12 = vector.load %arg3[%c0_12, %c0_13] : memref<128x128xf32, #tpu.memory_space<vmem>>, vector<128x128xf32>
    %cst_14 = arith.constant dense<0.000000e+00> : vector<8x128xf32>
    %13 = tpu.matmul %11, %12, %cst_14 {dimension_numbers = #tpu.dot_dimension_numbers<[1], [0], [0], [1], [0, 0, 1, 1], [], []>} : vector<8x128xf32>, vector<128x128xf32>, vector<8x128xf32> -> vector<8x128xf32>
    %14 = vector.broadcast %1 : vector<1x128xf32> to vector<8x128xf32>
    %15 = arith.addf %13, %14 : vector<8x128xf32>
    %cst_15 = arith.constant 0.000000e+00 : f32
    %16 = vector.broadcast %cst_15 : f32 to vector<8x128xf32>
    %17 = arith.maximumf %15, %16 : vector<8x128xf32>
    %c0_16 = arith.constant 0 : index
    %c0_17 = arith.constant 0 : index
    %18 = vector.load %arg4[%c0_16, %c0_17] : memref<128x128xf32, #tpu.memory_space<vmem>>, vector<128x128xf32>
    %cst_18 = arith.constant dense<0.000000e+00> : vector<8x128xf32>
    %19 = tpu.matmul %17, %18, %cst_18 {dimension_numbers = #tpu.dot_dimension_numbers<[1], [0], [0], [1], [0, 0, 1, 1], [], []>} : vector<8x128xf32>, vector<128x128xf32>, vector<8x128xf32> -> vector<8x128xf32>
    %20 = vector.broadcast %2 : vector<1x128xf32> to vector<8x128xf32>
    %21 = arith.addf %19, %20 : vector<8x128xf32>
    %cst_19 = arith.constant dense<0.000000e+00> : vector<8xf32>
    %22 = vector.multi_reduction <add>, %21, %cst_19 [1] : vector<8x128xf32> to vector<8xf32>
    %23 = vector.shape_cast %22 : vector<8xf32> to vector<8x1xf32>
    %cst_20 = arith.constant 6.250000e-02 : f32
    %24 = vector.broadcast %cst_20 : f32 to vector<8x1xf32>
    %25 = arith.mulf %23, %24 : vector<8x1xf32>
    %26 = vector.broadcast %25 : vector<8x1xf32> to vector<8x128xf32>
    %27 = arith.subf %21, %26 : vector<8x128xf32>
    %28 = tpu.iota {dimensions = array<i32: 1>} : vector<8x128xi32>
    %c16_i32 = arith.constant 16 : i32
    %29 = vector.broadcast %c16_i32 : i32 to vector<8x128xi32>
    %30 = arith.cmpi slt, %28, %29 : vector<8x128xi32>
    %cst_21 = arith.constant 0.000000e+00 : f32
    %31 = vector.broadcast %cst_21 : f32 to vector<8x128xf32>
    %32 = arith.select %30, %27, %31 : vector<8x128xi1>, vector<8x128xf32>
    %33 = arith.mulf %32, %32 : vector<8x128xf32>
    %cst_22 = arith.constant dense<0.000000e+00> : vector<8xf32>
    %34 = vector.multi_reduction <add>, %33, %cst_22 [1] : vector<8x128xf32> to vector<8xf32>
    %35 = vector.shape_cast %34 : vector<8xf32> to vector<8x1xf32>
    %cst_23 = arith.constant 6.250000e-02 : f32
    %36 = vector.broadcast %cst_23 : f32 to vector<8x1xf32>
    %37 = arith.mulf %35, %36 : vector<8x1xf32>
    %cst_24 = arith.constant 9.99999974E-6 : f32
    %38 = vector.broadcast %cst_24 : f32 to vector<8x1xf32>
    %39 = arith.addf %37, %38 : vector<8x1xf32>
    %40 = math.rsqrt %39 : vector<8x1xf32>
    %41 = vector.broadcast %40 : vector<8x1xf32> to vector<8x128xf32>
    %42 = arith.mulf %32, %41 : vector<8x128xf32>
    %43 = vector.broadcast %3 : vector<1x128xf32> to vector<8x128xf32>
    %44 = arith.mulf %42, %43 : vector<8x128xf32>
    %45 = vector.broadcast %4 : vector<1x128xf32> to vector<8x128xf32>
    %46 = arith.addf %44, %45 : vector<8x128xf32>
    %c0_25 = arith.constant 0 : index
    %c0_26 = arith.constant 0 : index
    %47 = vector.load %arg7[%c0_25, %c0_26] : memref<8x128xf32, #tpu.memory_space<vmem>>, vector<8x128xf32>
    tpu.vector_store %arg7[%c0_25, %c0_26], %46 {strides = array<i32>} : memref<8x128xf32, #tpu.memory_space<vmem>>, vector<8x128xf32>,
    return
  }
  func.func @transform_0(%arg0: i32) -> (i32, i32) {
    %c0_i32 = arith.constant 0 : i32
    %c0_i32_0 = arith.constant 0 : i32
    return %arg0, %c0_i32 : i32, i32
  }
  func.func @transform_1(%arg0: i32) -> (i32, i32) {
    %c0_i32 = arith.constant 0 : i32
    %c0_i32_0 = arith.constant 0 : i32
    %c0_i32_1 = arith.constant 0 : i32
    return %c0_i32, %c0_i32_0 : i32, i32
  }
  func.func @transform_2(%arg0: i32) -> (i32, i32) {
    %c0_i32 = arith.constant 0 : i32
    %c0_i32_0 = arith.constant 0 : i32
    %c0_i32_1 = arith.constant 0 : i32
    return %c0_i32, %c0_i32_0 : i32, i32
  }
  func.func @transform_3(%arg0: i32) -> (i32, i32) {
    %c0_i32 = arith.constant 0 : i32
    %c0_i32_0 = arith.constant 0 : i32
    %c0_i32_1 = arith.constant 0 : i32
    return %c0_i32, %c0_i32_0 : i32, i32
  }
  func.func @transform_4(%arg0: i32) -> (i32, i32) {
    %c0_i32 = arith.constant 0 : i32
    %c0_i32_0 = arith.constant 0 : i32
    %c0_i32_1 = arith.constant 0 : i32
    return %c0_i32, %c0_i32_0 : i32, i32
  }
  func.func @transform_5(%arg0: i32) -> (i32, i32) {
    %c0_i32 = arith.constant 0 : i32
    %c0_i32_0 = arith.constant 0 : i32
    %c0_i32_1 = arith.constant 0 : i32
    return %c0_i32, %c0_i32_0 : i32, i32
  }
  func.func @transform_6(%arg0: i32) -> (i32, i32) {
    %c0_i32 = arith.constant 0 : i32
    %c0_i32_0 = arith.constant 0 : i32
    return %arg0, %c0_i32 : i32, i32
  }
}

module attributes {stable_mosaic.version = 11 : i64} {
  func.func @_mlp_kernel(%arg0: i32, %arg1: memref<8x128xf32, #tpu.memory_space<vmem>>, %arg2: memref<128x128xf32, #tpu.memory_space<vmem>>, %arg3: memref<128x128xf32, #tpu.memory_space<vmem>>, %arg4: memref<128x128xf32, #tpu.memory_space<vmem>>, %arg5: memref<2x128xf32, #tpu.memory_space<vmem>>, %arg6: memref<3x128xf32, #tpu.memory_space<vmem>>, %arg7: memref<8x128xf32, #tpu.memory_space<vmem>>) attributes {dimension_semantics = [#tpu.dimension_semantics<parallel>], iteration_bounds = array<i64: 1>, scalar_prefetch = 0 : i64, scratch_operands = 0 : i64, tpu.core_type = #tpu.core_type<tc>, window_params = [{transform_indices = @transform_0, window_bounds = array<i64: 8, 128>}, {pipeline_mode = #tpu.pipeline_mode<synchronous>, transform_indices = @transform_1, window_bounds = array<i64: 128, 128>}, {pipeline_mode = #tpu.pipeline_mode<synchronous>, transform_indices = @transform_2, window_bounds = array<i64: 128, 128>}, {pipeline_mode = #tpu.pipeline_mode<synchronous>, transform_indices = @transform_3, window_bounds = array<i64: 128, 128>}, {pipeline_mode = #tpu.pipeline_mode<synchronous>, transform_indices = @transform_4, window_bounds = array<i64: 2, 128>}, {pipeline_mode = #tpu.pipeline_mode<synchronous>, transform_indices = @transform_5, window_bounds = array<i64: 3, 128>}, {transform_indices = @transform_6, window_bounds = array<i64: 8, 128>}]} {
    %c0 = arith.constant 0 : index
    %c0_0 = arith.constant 0 : index
    %0 = vector.load %arg5[%c0, %c0_0] : memref<2x128xf32, #tpu.memory_space<vmem>>, vector<1x128xf32>
    %c1 = arith.constant 1 : index
    %c0_1 = arith.constant 0 : index
    %1 = vector.load %arg5[%c1, %c0_1] : memref<2x128xf32, #tpu.memory_space<vmem>>, vector<1x128xf32>
    %c0_2 = arith.constant 0 : index
    %c0_3 = arith.constant 0 : index
    %2 = vector.load %arg6[%c0_2, %c0_3] : memref<3x128xf32, #tpu.memory_space<vmem>>, vector<1x128xf32>
    %c1_4 = arith.constant 1 : index
    %c0_5 = arith.constant 0 : index
    %3 = vector.load %arg6[%c1_4, %c0_5] : memref<3x128xf32, #tpu.memory_space<vmem>>, vector<1x128xf32>
    %c2 = arith.constant 2 : index
    %c0_6 = arith.constant 0 : index
    %4 = vector.load %arg6[%c2, %c0_6] : memref<3x128xf32, #tpu.memory_space<vmem>>, vector<1x128xf32>
    %c0_7 = arith.constant 0 : index
    %c0_8 = arith.constant 0 : index
    %5 = vector.load %arg1[%c0_7, %c0_8] : memref<8x128xf32, #tpu.memory_space<vmem>>, vector<8x128xf32>
    %c0_9 = arith.constant 0 : index
    %c0_10 = arith.constant 0 : index
    %6 = vector.load %arg2[%c0_9, %c0_10] : memref<128x128xf32, #tpu.memory_space<vmem>>, vector<128x128xf32>
    %cst = arith.constant dense<0.000000e+00> : vector<8x128xf32>
    %7 = tpu.matmul %5, %6, %cst {dimension_numbers = #tpu.dot_dimension_numbers<[1], [0], [0], [1], [0, 0, 1, 1], [], []>} : vector<8x128xf32>, vector<128x128xf32>, vector<8x128xf32> -> vector<8x128xf32>
    %8 = vector.broadcast %0 : vector<1x128xf32> to vector<8x128xf32>
    %9 = arith.addf %7, %8 : vector<8x128xf32>
    %cst_11 = arith.constant 0.000000e+00 : f32
    %10 = vector.broadcast %cst_11 : f32 to vector<8x128xf32>
    %11 = arith.maximumf %9, %10 : vector<8x128xf32>
    %c0_12 = arith.constant 0 : index
    %c0_13 = arith.constant 0 : index
    %12 = vector.load %arg3[%c0_12, %c0_13] : memref<128x128xf32, #tpu.memory_space<vmem>>, vector<128x128xf32>
    %cst_14 = arith.constant dense<0.000000e+00> : vector<8x128xf32>
    %13 = tpu.matmul %11, %12, %cst_14 {dimension_numbers = #tpu.dot_dimension_numbers<[1], [0], [0], [1], [0, 0, 1, 1], [], []>} : vector<8x128xf32>, vector<128x128xf32>, vector<8x128xf32> -> vector<8x128xf32>
    %14 = vector.broadcast %1 : vector<1x128xf32> to vector<8x128xf32>
    %15 = arith.addf %13, %14 : vector<8x128xf32>
    %cst_15 = arith.constant 0.000000e+00 : f32
    %16 = vector.broadcast %cst_15 : f32 to vector<8x128xf32>
    %17 = arith.maximumf %15, %16 : vector<8x128xf32>
    %c0_16 = arith.constant 0 : index
    %c0_17 = arith.constant 0 : index
    %18 = vector.load %arg4[%c0_16, %c0_17] : memref<128x128xf32, #tpu.memory_space<vmem>>, vector<128x128xf32>
    %cst_18 = arith.constant dense<0.000000e+00> : vector<8x128xf32>
    %19 = tpu.matmul %17, %18, %cst_18 {dimension_numbers = #tpu.dot_dimension_numbers<[1], [0], [0], [1], [0, 0, 1, 1], [], []>} : vector<8x128xf32>, vector<128x128xf32>, vector<8x128xf32> -> vector<8x128xf32>
    %20 = vector.broadcast %2 : vector<1x128xf32> to vector<8x128xf32>
    %21 = arith.addf %19, %20 : vector<8x128xf32>
    %cst_19 = arith.constant dense<0.000000e+00> : vector<8xf32>
    %22 = vector.multi_reduction <add>, %21, %cst_19 [1] : vector<8x128xf32> to vector<8xf32>
    %23 = vector.shape_cast %22 : vector<8xf32> to vector<8x1xf32>
    %cst_20 = arith.constant 6.250000e-02 : f32
    %24 = vector.broadcast %cst_20 : f32 to vector<8x1xf32>
    %25 = arith.mulf %23, %24 : vector<8x1xf32>
    %26 = vector.broadcast %25 : vector<8x1xf32> to vector<8x128xf32>
    %27 = arith.subf %21, %26 : vector<8x128xf32>
    %28 = tpu.iota {dimensions = array<i32: 1>} : vector<8x128xi32>
    %c16_i32 = arith.constant 16 : i32
    %29 = vector.broadcast %c16_i32 : i32 to vector<8x128xi32>
    %30 = arith.cmpi slt, %28, %29 : vector<8x128xi32>
    %cst_21 = arith.constant 0.000000e+00 : f32
    %31 = vector.broadcast %cst_21 : f32 to vector<8x128xf32>
    %32 = arith.select %30, %27, %31 : vector<8x128xi1>, vector<8x128xf32>
    %33 = arith.mulf %32, %32 : vector<8x128xf32>
    %cst_22 = arith.constant dense<0.000000e+00> : vector<8xf32>
    %34 = vector.multi_reduction <add>, %33, %cst_22 [1] : vector<8x128xf32> to vector<8xf32>
    %35 = vector.shape_cast %34 : vector<8xf32> to vector<8x1xf32>
    %cst_23 = arith.constant 6.250000e-02 : f32
    %36 = vector.broadcast %cst_23 : f32 to vector<8x1xf32>
    %37 = arith.mulf %35, %36 : vector<8x1xf32>
    %cst_24 = arith.constant 9.99999974E-6 : f32
    %38 = vector.broadcast %cst_24 : f32 to vector<8x1xf32>
    %39 = arith.addf %37, %38 : vector<8x1xf32>
    %40 = math.rsqrt %39 : vector<8x1xf32>
    %41 = vector.broadcast %40 : vector<8x1xf32> to vector<8x128xf32>
    %42 = arith.mulf %32, %41 : vector<8x128xf32>
    %43 = vector.broadcast %3 : vector<1x128xf32> to vector<8x128xf32>
    %44 = arith.mulf %42, %43 : vector<8x128xf32>
    %45 = vector.broadcast %4 : vector<1x128xf32> to vector<8x128xf32>
    %46 = arith.addf %44, %45 : vector<8x128xf32>
    %c0_25 = arith.constant 0 : index
    %c0_26 = arith.constant 0 : index
    %47 = vector.load %arg7[%c0_25, %c0_26] : memref<8x128xf32, #tpu.memory_space<vmem>>, vector<8x128xf32>
    tpu.vector_store %arg7[%c0_25, %c0_26], %46 {strides = array<i32>} : memref<8x128xf32, #tpu.memory_space<vmem>>, vector<8x128xf32>,
    return
  }
  func.func @transform_0(%arg0: i32) -> (i32, i32) {
    %c0_i32 = arith.constant 0 : i32
    %c0_i32_0 = arith.constant 0 : i32
    return %arg0, %c0_i32 : i32, i32
  }
  func.func @transform_1(%arg0: i32) -> (i32, i32) {
    %c0_i32 = arith.constant 0 : i32
    %c0_i32_0 = arith.constant 0 : i32
    %c0_i32_1 = arith.constant 0 : i32
    return %c0_i32, %c0_i32_0 : i32, i32
  }
  func.func @transform_2(%arg0: i32) -> (i32, i32) {
    %c0_i32 = arith.constant 0 : i32
    %c0_i32_0 = arith.constant 0 : i32
    %c0_i32_1 = arith.constant 0 : i32
    return %c0_i32, %c0_i32_0 : i32, i32
  }
  func.func @transform_3(%arg0: i32) -> (i32, i32) {
    %c0_i32 = arith.constant 0 : i32
    %c0_i32_0 = arith.constant 0 : i32
    %c0_i32_1 = arith.constant 0 : i32
    return %c0_i32, %c0_i32_0 : i32, i32
  }
  func.func @transform_4(%arg0: i32) -> (i32, i32) {
    %c0_i32 = arith.constant 0 : i32
    %c0_i32_0 = arith.constant 0 : i32
    %c0_i32_1 = arith.constant 0 : i32
    return %c0_i32, %c0_i32_0 : i32, i32
  }
  func.func @transform_5(%arg0: i32) -> (i32, i32) {
    %c0_i32 = arith.constant 0 : i32
    %c0_i32_0 = arith.constant 0 : i32
    %c0_i32_1 = arith.constant 0 : i32
    return %c0_i32, %c0_i32_0 : i32, i32
  }
  func.func @transform_6(%arg0: i32) -> (i32, i32) {
    %c0_i32 = arith.constant 0 : i32
    %c0_i32_0 = arith.constant 0 : i32
    return %arg0, %c0_i32 : i32, i32
  }
}

</mosaic_0001>

<llo_original>
// kernel: tpu_custom_call.1
$region0: #{tpu_custom_call.1}
  #allocation0 [shape = 'u32[]', space=smem, size = 0x4, offset = 0x4, fixed_abs, tag = 'smem constant byte address 0x4 - core index']
  #allocation1 [shape = 'u32[144,128]{1,0:T(1,128)}', space=vmem, size = 0x12000, scoped, tag = 'internal scratch']
  %s0 = inlined_call_operand.hbm [shape: f32[8,128], index: 0, kind: input, shape index: {}]
  %s1 = inlined_call_operand.hbm [shape: f32[128,128], index: 1, kind: input, shape index: {}]
  %s2 = inlined_call_operand.hbm [shape: f32[128,128], index: 2, kind: input, shape index: {}]
  %s3 = inlined_call_operand.hbm [shape: f32[128,128], index: 3, kind: input, shape index: {}]
  %s4 = inlined_call_operand.vmem [shape: f32[2,128], index: 4, kind: input, shape index: {}]
  %s5 = inlined_call_operand.vmem [shape: f32[3,128], index: 5, kind: input, shape index: {}]
  %s6 = inlined_call_operand.hbm [shape: f32[8,128], index: 6, kind: output, shape index: {}]
  %s7 = sld [smem:[#allocation0]]
  $region50: #{tpu_custom_call.1} parent=0
    _
  %s9 = ssub.s32 1, %s7
  %s10 = scalar_select 0, %s9, %s7
  $region1: #{tpu_custom_call.1} parent=0
    #allocation2 [shape = 'u8[4096]{0}', space=vmem, size = 0x1000, scoped, tag = 'input window, operand 0, single buffered']
    #allocation3 [shape = 's32[1]{0}', space=sflag, size = 0x4, scoped, tag = 'scoped memory for tpu_custom_call.1']
    #allocation4 [shape = 's32[1]{0}', space=sflag, size = 0x4, scoped, tag = 'scoped memory for tpu_custom_call.1']
    #allocation5 [shape = 'u8[65536]{0}', space=vmem, size = 0x10000, scoped, tag = 'input window, operand 1, single buffered']
    #allocation6 [shape = 's32[1]{0}', space=sflag, size = 0x4, scoped, tag = 'scoped memory for tpu_custom_call.1']
    #allocation7 [shape = 'u8[65536]{0}', space=vmem, size = 0x10000, scoped, tag = 'input window, operand 2, single buffered']
    #allocation8 [shape = 'u8[65536]{0}', space=vmem, size = 0x10000, scoped, tag = 'input window, operand 3, single buffered']
    #allocation9 [shape = 's32[1]{0}', space=sflag, size = 0x4, scoped, tag = 'scoped memory for tpu_custom_call.1']
    #allocation10 [shape = 'u8[4096]{0}', space=vmem, size = 0x1000, scoped, tag = 'output window, operand 0, single buffered']
    %11 = vsyncpa [#allocation3], 0
    %12 = vsyncpa [#allocation6], 0
    %13 = vsyncpa [#allocation9], 0
    %14 = vsyncpa [#allocation4], 0
    // Predicated region
    $region2: #{tpu_custom_call.1} parent=1 // pred_check
      _
    $region3: #{tpu_custom_call.1} parent=1 // pred_check_branch
      %16 = sbr.rel (0) target = $region5
    $region4: #{tpu_custom_call.1} parent=1 // pred_region
      %s18 = ssub.s32 128, 128
      %19 = vsyncadd [#allocation3], %s18
      %s21 = sshll.u32 [#allocation2], 4
      %s22 = int_to_ptr.vmem [resolvable:$true] %s21
      %24 = dma.hbm_to_vmem [thread:$0]  %s0, 128, %s22, [#allocation3]
    $region5: #{tpu_custom_call.1} parent=1 // pred_fallthru
      _
    // Predicated region
    $region6: #{tpu_custom_call.1} parent=1 // pred_check
      _
    $region7: #{tpu_custom_call.1} parent=1 // pred_check_branch
      %26 = sbr.rel (0) target = $region9
    $region8: #{tpu_custom_call.1} parent=1 // pred_region
      %s28 = ssub.s32 2048, 2048
      %29 = vsyncadd [#allocation6], %s28
      %s30 = sshll.u32 [#allocation5], 4
      %s31 = int_to_ptr.vmem [resolvable:$true] %s30
      %36 = dma.hbm_to_vmem [thread:$0]  %s1, 2048, %s31, [#allocation6], 128, 128, 8
    $region9: #{tpu_custom_call.1} parent=1 // pred_fallthru
      _
    // Predicated region
    $region10: #{tpu_custom_call.1} parent=1 // pred_check
      _
    $region11: #{tpu_custom_call.1} parent=1 // pred_check_branch
      %38 = sbr.rel (0) target = $region13
    $region12: #{tpu_custom_call.1} parent=1 // pred_region
      %s40 = ssub.s32 2048, 2048
      %41 = vsyncadd [#allocation6], %s40
      %s42 = sshll.u32 [#allocation7], 4
      %s43 = int_to_ptr.vmem [resolvable:$true] %s42
      %48 = dma.hbm_to_vmem [thread:$0]  %s2, 2048, %s43, [#allocation6], 128, 128, 8
    $region13: #{tpu_custom_call.1} parent=1 // pred_fallthru
      _
    // Predicated region
    $region14: #{tpu_custom_call.1} parent=1 // pred_check
      _
    $region15: #{tpu_custom_call.1} parent=1 // pred_check_branch
      %50 = sbr.rel (0) target = $region17
    $region16: #{tpu_custom_call.1} parent=1 // pred_region
      %s52 = ssub.s32 2048, 2048
      %53 = vsyncadd [#allocation9], %s52
      %s54 = sshll.u32 [#allocation8], 4
      %s55 = int_to_ptr.vmem [resolvable:$true] %s54
      %60 = dma.hbm_to_vmem [thread:$0]  %s3, 2048, %s55, [#allocation9], 128, 128, 8
    $region17: #{tpu_custom_call.1} parent=1 // pred_fallthru
      _
    // Predicated region
    $region18: #{tpu_custom_call.1} parent=1 // pred_check
      _
    $region19: #{tpu_custom_call.1} parent=1 // pred_check_branch
      %62 = sbr.rel (0) target = $region21
    $region20: #{tpu_custom_call.1} parent=1 // pred_region
      _
    $region21: #{tpu_custom_call.1} parent=1 // pred_fallthru
      _
    // Predicated region
    $region22: #{tpu_custom_call.1} parent=1 // pred_check
      _
    $region23: #{tpu_custom_call.1} parent=1 // pred_check_branch
      %64 = sbr.rel (0) target = $region25
    $region24: #{tpu_custom_call.1} parent=1 // pred_region
      _
    $region25: #{tpu_custom_call.1} parent=1 // pred_fallthru
      _
    // Predicated region
    $region26: #{tpu_custom_call.1} parent=1 // pred_check
      _
    $region27: #{tpu_custom_call.1} parent=1 // pred_check_branch
      %66 = sbr.rel (0) target = $region29
    $region28: #{tpu_custom_call.1} parent=1 // pred_region
      %67 = dma.done [#allocation3], 128
    $region29: #{tpu_custom_call.1} parent=1 // pred_fallthru
      _
    // Predicated region
    $region30: #{tpu_custom_call.1} parent=1 // pred_check
      _
    $region31: #{tpu_custom_call.1} parent=1 // pred_check_branch
      %69 = sbr.rel (0) target = $region33
    $region32: #{tpu_custom_call.1} parent=1 // pred_region
      %70 = dma.done [#allocation6], 2048
    $region33: #{tpu_custom_call.1} parent=1 // pred_fallthru
      _
    // Predicated region
    $region34: #{tpu_custom_call.1} parent=1 // pred_check
      _
    $region35: #{tpu_custom_call.1} parent=1 // pred_check_branch
      %72 = sbr.rel (0) target = $region37
    $region36: #{tpu_custom_call.1} parent=1 // pred_region
      %73 = dma.done [#allocation6], 2048
    $region37: #{tpu_custom_call.1} parent=1 // pred_fallthru
      _
    // Predicated region
    $region38: #{tpu_custom_call.1} parent=1 // pred_check
      _
    $region39: #{tpu_custom_call.1} parent=1 // pred_check_branch
      %75 = sbr.rel (0) target = $region41
    $region40: #{tpu_custom_call.1} parent=1 // pred_region
      %76 = dma.done [#allocation9], 2048
    $region41: #{tpu_custom_call.1} parent=1 // pred_fallthru
      _
    %v77 = vld [vmem:[%s4] sm:$0x1]
    %v78 = vld [vmem:[%s4 + $0x1] sm:$0x1]
    %v79 = vld [vmem:[%s5] sm:$0x1]
    %v80 = vld [vmem:[%s5 + $0x1] sm:$0x1]
    %v81 = vld [vmem:[%s5 + $0x2] sm:$0x1]
    %v82 = vld [vmem:[#allocation2] sm:$0xff]
    %v83 = vld [vmem:[#allocation5] sm:$0xff]
    %v84 = vld [vmem:[#allocation5 + $0x8] sm:$0xff]
    %v85 = vld [vmem:[#allocation5 + $0x10] sm:$0xff]
    %v86 = vld [vmem:[#allocation5 + $0x18] sm:$0xff]
    %v87 = vld [vmem:[#allocation5 + $0x20] sm:$0xff]
    %v88 = vld [vmem:[#allocation5 + $0x28] sm:$0xff]
    %v89 = vld [vmem:[#allocation5 + $0x30] sm:$0xff]
    %v90 = vld [vmem:[#allocation5 + $0x38] sm:$0xff]
    %v91 = vld [vmem:[#allocation5 + $0x40] sm:$0xff]
    %v92 = vld [vmem:[#allocation5 + $0x48] sm:$0xff]
    %v93 = vld [vmem:[#allocation5 + $0x50] sm:$0xff]
    %v94 = vld [vmem:[#allocation5 + $0x58] sm:$0xff]
    %v95 = vld [vmem:[#allocation5 + $0x60] sm:$0xff]
    %v96 = vld [vmem:[#allocation5 + $0x68] sm:$0xff]
    %v97 = vld [vmem:[#allocation5 + $0x70] sm:$0xff]
    %v98 = vld [vmem:[#allocation5 + $0x78] sm:$0xff]
    %v99 = vlaneseq
    %v100 = vshrl.u32 %v99, 7
    %v101 = vsub.s32 0, %v100
    %v102 = vrot.slane %v77, %v101
    %103 = vmatprep.subr.mxu0 0.0
    %104 = vmatpush1.msra.mxu0 %v98
    %105 = vmatprep.subr.mxu0 0.0
    %106 = vmatpush1.msra.mxu0 %v97
    %107 = vmatprep.subr.mxu0 0.0
    %108 = vmatpush1.msra.mxu0 %v96
    %109 = vmatprep.subr.mxu0 0.0
    %110 = vmatpush1.msra.mxu0 %v95
    %111 = vmatprep.subr.mxu0 0.0
    %112 = vmatpush1.msra.mxu0 %v94
    %113 = vmatprep.subr.mxu0 0.0
    %114 = vmatpush1.msra.mxu0 %v93
    %115 = vmatprep.subr.mxu0 0.0
    %116 = vmatpush1.msra.mxu0 %v92
    %117 = vmatprep.subr.mxu0 0.0
    %118 = vmatpush1.msra.mxu0 %v91
    %119 = vmatprep.subr.mxu0 0.0
    %120 = vmatpush1.msra.mxu0 %v90
    %121 = vmatprep.subr.mxu0 0.0
    %122 = vmatpush1.msra.mxu0 %v89
    %123 = vmatprep.subr.mxu0 0.0
    %124 = vmatpush1.msra.mxu0 %v88
    %125 = vmatprep.subr.mxu0 0.0
    %126 = vmatpush1.msra.mxu0 %v87
    %127 = vmatprep.subr.mxu0 0.0
    %128 = vmatpush1.msra.mxu0 %v86
    %129 = vmatprep.subr.mxu0 0.0
    %130 = vmatpush1.msra.mxu0 %v85
    %131 = vmatprep.subr.mxu0 0.0
    %132 = vmatpush1.msra.mxu0 %v84
    %133 = vmatprep.subr.mxu0 0.0
    %134 = vmatpush1.msra.mxu0 %v83
    %135 = vmatprep.subr.mxu0 0.0
    %136 = vmatpush2.msra.mxu0 0.0
    %137 = vmatprep.subr.mxu0 0.0
    %138 = vmatpush2.msra.mxu0 0.0
    %139 = vmatprep.subr.mxu0 0.0
    %140 = vmatpush2.msra.mxu0 0.0
    %141 = vmatprep.subr.mxu0 0.0
    %142 = vmatpush2.msra.mxu0 0.0
    %143 = vmatprep.subr.mxu0 0.0
    %144 = vmatpush2.msra.mxu0 0.0
    %145 = vmatprep.subr.mxu0 0.0
    %146 = vmatpush2.msra.mxu0 0.0
    %147 = vmatprep.subr.mxu0 0.0
    %148 = vmatpush2.msra.mxu0 0.0
    %149 = vmatprep.subr.mxu0 0.0
    %150 = vmatpush2.msra.mxu0 0.0
    %151 = vmatprep.subr.mxu0 0.0
    %152 = vmatpush2.msra.mxu0 0.0
    %153 = vmatprep.subr.mxu0 0.0
    %154 = vmatpush2.msra.mxu0 0.0
    %155 = vmatprep.subr.mxu0 0.0
    %156 = vmatpush2.msra.mxu0 0.0
    %157 = vmatprep.subr.mxu0 0.0
    %158 = vmatpush2.msra.mxu0 0.0
    %159 = vmatprep.subr.mxu0 0.0
    %160 = vmatpush2.msra.mxu0 0.0
    %161 = vmatprep.subr.mxu0 0.0
    %162 = vmatpush2.msra.mxu0 0.0
    %163 = vmatprep.subr.mxu0 0.0
    %164 = vmatpush2.msra.mxu0 0.0
    %165 = vmatprep.subr.mxu0 0.0
    %166 = vmatpush2.msra.mxu0 0.0
    %167 = vmatprep.mubr.f32.mxu0 0.0
    %168 = vmatmul.mubr.f32.gmra.mxu0 %v82
    %v169 = vpop.f32.mrf.mxu0
    %v170 = vadd.f32 %v102, %v169
    %v171 = vpop.f32.mrf.mxu0
    %172 = vdwg.mxu0
    %v173 = vmax.f32 %v170, 0.0
    %v174 = vld [vmem:[#allocation7] sm:$0xff]
    %v175 = vld [vmem:[#allocation7 + $0x8] sm:$0xff]
    %v176 = vld [vmem:[#allocation7 + $0x10] sm:$0xff]
    %v177 = vld [vmem:[#allocation7 + $0x18] sm:$0xff]
    %v178 = vld [vmem:[#allocation7 + $0x20] sm:$0xff]
    %v179 = vld [vmem:[#allocation7 + $0x28] sm:$0xff]
    %v180 = vld [vmem:[#allocation7 + $0x30] sm:$0xff]
    %v181 = vld [vmem:[#allocation7 + $0x38] sm:$0xff]
    %v182 = vld [vmem:[#allocation7 + $0x40] sm:$0xff]
    %v183 = vld [vmem:[#allocation7 + $0x48] sm:$0xff]
    %v184 = vld [vmem:[#allocation7 + $0x50] sm:$0xff]
    %v185 = vld [vmem:[#allocation7 + $0x58] sm:$0xff]
    %v186 = vld [vmem:[#allocation7 + $0x60] sm:$0xff]
    %v187 = vld [vmem:[#allocation7 + $0x68] sm:$0xff]
    %v188 = vld [vmem:[#allocation7 + $0x70] sm:$0xff]
    %v189 = vld [vmem:[#allocation7 + $0x78] sm:$0xff]
    %v190 = vlaneseq
    %v191 = vshrl.u32 %v190, 7
    %v192 = vsub.s32 0, %v191
    %v193 = vrot.slane %v78, %v192
    %194 = vmatprep.subr.mxu0 0.0
    %195 = vmatpush1.msra.mxu0 %v189
    %196 = vmatprep.subr.mxu0 0.0
    %197 = vmatpush1.msra.mxu0 %v188
    %198 = vmatprep.subr.mxu0 0.0
    %199 = vmatpush1.msra.mxu0 %v187
    %200 = vmatprep.subr.mxu0 0.0
    %201 = vmatpush1.msra.mxu0 %v186
    %202 = vmatprep.subr.mxu0 0.0
    %203 = vmatpush1.msra.mxu0 %v185
    %204 = vmatprep.subr.mxu0 0.0
    %205 = vmatpush1.msra.mxu0 %v184
    %206 = vmatprep.subr.mxu0 0.0
    %207 = vmatpush1.msra.mxu0 %v183
    %208 = vmatprep.subr.mxu0 0.0
    %209 = vmatpush1.msra.mxu0 %v182
    %210 = vmatprep.subr.mxu0 0.0
    %211 = vmatpush1.msra.mxu0 %v181
    %212 = vmatprep.subr.mxu0 0.0
    %213 = vmatpush1.msra.mxu0 %v180
    %214 = vmatprep.subr.mxu0 0.0
    %215 = vmatpush1.msra.mxu0 %v179
    %216 = vmatprep.subr.mxu0 0.0
    %217 = vmatpush1.msra.mxu0 %v178
    %218 = vmatprep.subr.mxu0 0.0
    %219 = vmatpush1.msra.mxu0 %v177
    %220 = vmatprep.subr.mxu0 0.0
    %221 = vmatpush1.msra.mxu0 %v176
    %222 = vmatprep.subr.mxu0 0.0
    %223 = vmatpush1.msra.mxu0 %v175
    %224 = vmatprep.subr.mxu0 0.0
    %225 = vmatpush1.msra.mxu0 %v174
    %226 = vmatprep.subr.mxu0 0.0
    %227 = vmatpush2.msra.mxu0 0.0
    %228 = vmatprep.subr.mxu0 0.0
    %229 = vmatpush2.msra.mxu0 0.0
    %230 = vmatprep.subr.mxu0 0.0
    %231 = vmatpush2.msra.mxu0 0.0
    %232 = vmatprep.subr.mxu0 0.0
    %233 = vmatpush2.msra.mxu0 0.0
    %234 = vmatprep.subr.mxu0 0.0
    %235 = vmatpush2.msra.mxu0 0.0
    %236 = vmatprep.subr.mxu0 0.0
    %237 = vmatpush2.msra.mxu0 0.0
    %238 = vmatprep.subr.mxu0 0.0
    %239 = vmatpush2.msra.mxu0 0.0
    %240 = vmatprep.subr.mxu0 0.0
    %241 = vmatpush2.msra.mxu0 0.0
    %242 = vmatprep.subr.mxu0 0.0
    %243 = vmatpush2.msra.mxu0 0.0
    %244 = vmatprep.subr.mxu0 0.0
    %245 = vmatpush2.msra.mxu0 0.0
    %246 = vmatprep.subr.mxu0 0.0
    %247 = vmatpush2.msra.mxu0 0.0
    %248 = vmatprep.subr.mxu0 0.0
    %249 = vmatpush2.msra.mxu0 0.0
    %250 = vmatprep.subr.mxu0 0.0
    %251 = vmatpush2.msra.mxu0 0.0
    %252 = vmatprep.subr.mxu0 0.0
    %253 = vmatpush2.msra.mxu0 0.0
    %254 = vmatprep.subr.mxu0 0.0
    %255 = vmatpush2.msra.mxu0 0.0
    %256 = vmatprep.subr.mxu0 0.0
    %257 = vmatpush2.msra.mxu0 0.0
    %258 = vmatprep.mubr.f32.mxu0 0.0
    %259 = vmatmul.mubr.f32.gmra.mxu0 %v173
    %v260 = vpop.f32.mrf.mxu0
    %v261 = vadd.f32 %v193, %v260
    %v262 = vpop.f32.mrf.mxu0
    %263 = vdwg.mxu0
    %v264 = vmax.f32 %v261, 0.0
    %v265 = vld [vmem:[#allocation8] sm:$0xff]
    %v266 = vld [vmem:[#allocation8 + $0x8] sm:$0xff]
    %v267 = vld [vmem:[#allocation8 + $0x10] sm:$0xff]
    %v268 = vld [vmem:[#allocation8 + $0x18] sm:$0xff]
    %v269 = vld [vmem:[#allocation8 + $0x20] sm:$0xff]
    %v270 = vld [vmem:[#allocation8 + $0x28] sm:$0xff]
    %v271 = vld [vmem:[#allocation8 + $0x30] sm:$0xff]
    %v272 = vld [vmem:[#allocation8 + $0x38] sm:$0xff]
    %v273 = vld [vmem:[#allocation8 + $0x40] sm:$0xff]
    %v274 = vld [vmem:[#allocation8 + $0x48] sm:$0xff]
    %v275 = vld [vmem:[#allocation8 + $0x50] sm:$0xff]
    %v276 = vld [vmem:[#allocation8 + $0x58] sm:$0xff]
    %v277 = vld [vmem:[#allocation8 + $0x60] sm:$0xff]
    %v278 = vld [vmem:[#allocation8 + $0x68] sm:$0xff]
    %v279 = vld [vmem:[#allocation8 + $0x70] sm:$0xff]
    %v280 = vld [vmem:[#allocation8 + $0x78] sm:$0xff]
    %v281 = vlaneseq
    %v282 = vshrl.u32 %v281, 7
    %v283 = vsub.s32 0, %v282
    %v284 = vrot.slane %v79, %v283
    %285 = vmatprep.subr.mxu0 0.0
    %286 = vmatpush1.msra.mxu0 %v280
    %287 = vmatprep.subr.mxu0 0.0
    %288 = vmatpush1.msra.mxu0 %v279
    %289 = vmatprep.subr.mxu0 0.0
    %290 = vmatpush1.msra.mxu0 %v278
    %291 = vmatprep.subr.mxu0 0.0
    %292 = vmatpush1.msra.mxu0 %v277
    %293 = vmatprep.subr.mxu0 0.0
    %294 = vmatpush1.msra.mxu0 %v276
    %295 = vmatprep.subr.mxu0 0.0
    %296 = vmatpush1.msra.mxu0 %v275
    %297 = vmatprep.subr.mxu0 0.0
    %298 = vmatpush1.msra.mxu0 %v274
    %299 = vmatprep.subr.mxu0 0.0
    %300 = vmatpush1.msra.mxu0 %v273
    %301 = vmatprep.subr.mxu0 0.0
    %302 = vmatpush1.msra.mxu0 %v272
    %303 = vmatprep.subr.mxu0 0.0
    %304 = vmatpush1.msra.mxu0 %v271
    %305 = vmatprep.subr.mxu0 0.0
    %306 = vmatpush1.msra.mxu0 %v270
    %307 = vmatprep.subr.mxu0 0.0
    %308 = vmatpush1.msra.mxu0 %v269
    %309 = vmatprep.subr.mxu0 0.0
    %310 = vmatpush1.msra.mxu0 %v268
    %311 = vmatprep.subr.mxu0 0.0
    %312 = vmatpush1.msra.mxu0 %v267
    %313 = vmatprep.subr.mxu0 0.0
    %314 = vmatpush1.msra.mxu0 %v266
    %315 = vmatprep.subr.mxu0 0.0
    %316 = vmatpush1.msra.mxu0 %v265
    %317 = vmatprep.subr.mxu0 0.0
    %318 = vmatpush2.msra.mxu0 0.0
    %319 = vmatprep.subr.mxu0 0.0
    %320 = vmatpush2.msra.mxu0 0.0
    %321 = vmatprep.subr.mxu0 0.0
    %322 = vmatpush2.msra.mxu0 0.0
    %323 = vmatprep.subr.mxu0 0.0
    %324 = vmatpush2.msra.mxu0 0.0
    %325 = vmatprep.subr.mxu0 0.0
    %326 = vmatpush2.msra.mxu0 0.0
    %327 = vmatprep.subr.mxu0 0.0
    %328 = vmatpush2.msra.mxu0 0.0
    %329 = vmatprep.subr.mxu0 0.0
    %330 = vmatpush2.msra.mxu0 0.0
    %331 = vmatprep.subr.mxu0 0.0
    %332 = vmatpush2.msra.mxu0 0.0
    %333 = vmatprep.subr.mxu0 0.0
    %334 = vmatpush2.msra.mxu0 0.0
    %335 = vmatprep.subr.mxu0 0.0
    %336 = vmatpush2.msra.mxu0 0.0
    %337 = vmatprep.subr.mxu0 0.0
    %338 = vmatpush2.msra.mxu0 0.0
    %339 = vmatprep.subr.mxu0 0.0
    %340 = vmatpush2.msra.mxu0 0.0
    %341 = vmatprep.subr.mxu0 0.0
    %342 = vmatpush2.msra.mxu0 0.0
    %343 = vmatprep.subr.mxu0 0.0
    %344 = vmatpush2.msra.mxu0 0.0
    %345 = vmatprep.subr.mxu0 0.0
    %346 = vmatpush2.msra.mxu0 0.0
    %347 = vmatprep.subr.mxu0 0.0
    %348 = vmatpush2.msra.mxu0 0.0
    %349 = vmatprep.mubr.f32.mxu0 0.0
    %350 = vmatmul.mubr.f32.gmra.mxu0 %v264
    %v351 = vpop.f32.mrf.mxu0
    %v352 = vadd.f32 %v284, %v351
    %v353 = vpop.f32.mrf.mxu0
    %354 = vdwg.mxu0
    %355 = vadd.xlane.f32.xlu0 %v352
    %v356 = vpop.xlane.xlu0 %355
    %v357 = vmul.f32 %v356, 0.0625
    %v358 = vsub.f32 %v352, %v357
    %v359 = vlaneseq
    %v360 = vand.u32 %v359, 127
    %vm361 = vcmp.lt.s32.totalorder %v360, 16
    %v362 = vsel %vm361, %v358, 0.0
    %v363 = vmul.f32 %v362, %v362
    %364 = vadd.xlane.f32.xlu0 %v363
    %v365 = vpop.xlane.xlu0 %364
    %v366 = vmul.f32 %v365, 0.0625
    %v367 = vadd.f32 %v366, 1e-05
    %v368 = vrsqrt.pop %v367
    %v369 = vmul.f32 %v362, %v368
    %v370 = vlaneseq
    %v371 = vshrl.u32 %v370, 7
    %v372 = vsub.s32 0, %v371
    %v373 = vrot.slane %v80, %v372
    %v374 = vmul.f32 %v369, %v373
    %v375 = vlaneseq
    %v376 = vshrl.u32 %v375, 7
    %v377 = vsub.s32 0, %v376
    %v378 = vrot.slane %v81, %v377
    %v379 = vadd.f32 %v374, %v378
    %380 = vst [vmem:[#allocation10] sm:$0xff] %v379
    // Predicated region
    $region42: #{tpu_custom_call.1} parent=1 // pred_check
      _
    $region43: #{tpu_custom_call.1} parent=1 // pred_check_branch
      %382 = sbr.rel (0) target = $region45
    $region44: #{tpu_custom_call.1} parent=1 // pred_region
      %s384 = ssub.s32 128, 128
      %385 = vsyncadd [#allocation4], %s384
      %s387 = sshll.u32 [#allocation10], 4
      %s388 = int_to_ptr.vmem [resolvable:$true] %s387
      %390 = dma.vmem_to_hbm [thread:$0]  %s388, 128, %s6, [#allocation4]
    $region45: #{tpu_custom_call.1} parent=1 // pred_fallthru
      _
    // Predicated region
    $region46: #{tpu_custom_call.1} parent=1 // pred_check
      _
    $region47: #{tpu_custom_call.1} parent=1 // pred_check_branch
      %392 = sbr.rel (0) target = $region49
    $region48: #{tpu_custom_call.1} parent=1 // pred_region
      %393 = dma.done [#allocation4], 128
    $region49: #{tpu_custom_call.1} parent=1 // pred_fallthru
      _
    %394 = vsyncpa [#allocation3], 1
    %395 = vsyncpa [#allocation6], 1
    %396 = vsyncpa [#allocation9], 1
    %397 = vsyncpa [#allocation4], 1

// kernel: tpu_custom_call.1
$region0: #{tpu_custom_call.1}
  #allocation0 [shape = 'u32[]', space=smem, size = 0x4, offset = 0x4, fixed_abs, tag = 'smem constant byte address 0x4 - core index']
  #allocation1 [shape = 'u32[144,128]{1,0:T(1,128)}', space=vmem, size = 0x12000, scoped, tag = 'internal scratch']
  %s0 = inlined_call_operand.hbm [shape: f32[8,128], index: 0, kind: input, shape index: {}]
  %s1 = inlined_call_operand.hbm [shape: f32[128,128], index: 1, kind: input, shape index: {}]
  %s2 = inlined_call_operand.hbm [shape: f32[128,128], index: 2, kind: input, shape index: {}]
  %s3 = inlined_call_operand.hbm [shape: f32[128,128], index: 3, kind: input, shape index: {}]
  %s4 = inlined_call_operand.vmem [shape: f32[2,128], index: 4, kind: input, shape index: {}]
  %s5 = inlined_call_operand.vmem [shape: f32[3,128], index: 5, kind: input, shape index: {}]
  %s6 = inlined_call_operand.hbm [shape: f32[8,128], index: 6, kind: output, shape index: {}]
  %s7 = sld [smem:[#allocation0]]
  $region50: #{tpu_custom_call.1} parent=0
    _
  %s9 = ssub.s32 1, %s7
  %s10 = scalar_select 0, %s9, %s7
  $region1: #{tpu_custom_call.1} parent=0
    #allocation2 [shape = 'u8[4096]{0}', space=vmem, size = 0x1000, scoped, tag = 'input window, operand 0, single buffered']
    #allocation3 [shape = 's32[1]{0}', space=sflag, size = 0x4, scoped, tag = 'scoped memory for tpu_custom_call.1']
    #allocation4 [shape = 's32[1]{0}', space=sflag, size = 0x4, scoped, tag = 'scoped memory for tpu_custom_call.1']
    #allocation5 [shape = 'u8[65536]{0}', space=vmem, size = 0x10000, scoped, tag = 'input window, operand 1, single buffered']
    #allocation6 [shape = 's32[1]{0}', space=sflag, size = 0x4, scoped, tag = 'scoped memory for tpu_custom_call.1']
    #allocation7 [shape = 'u8[65536]{0}', space=vmem, size = 0x10000, scoped, tag = 'input window, operand 2, single buffered']
    #allocation8 [shape = 'u8[65536]{0}', space=vmem, size = 0x10000, scoped, tag = 'input window, operand 3, single buffered']
    #allocation9 [shape = 's32[1]{0}', space=sflag, size = 0x4, scoped, tag = 'scoped memory for tpu_custom_call.1']
    #allocation10 [shape = 'u8[4096]{0}', space=vmem, size = 0x1000, scoped, tag = 'output window, operand 0, single buffered']
    %11 = vsyncpa [#allocation3], 0
    %12 = vsyncpa [#allocation6], 0
    %13 = vsyncpa [#allocation9], 0
    %14 = vsyncpa [#allocation4], 0
    // Predicated region
    $region2: #{tpu_custom_call.1} parent=1 // pred_check
      _
    $region3: #{tpu_custom_call.1} parent=1 // pred_check_branch
      %16 = sbr.rel (0) target = $region5
    $region4: #{tpu_custom_call.1} parent=1 // pred_region
      %s18 = ssub.s32 128, 128
      %19 = vsyncadd [#allocation3], %s18
      %s21 = sshll.u32 [#allocation2], 4
      %s22 = int_to_ptr.vmem [resolvable:$true] %s21
      %24 = dma.hbm_to_vmem [thread:$0]  %s0, 128, %s22, [#allocation3]
    $region5: #{tpu_custom_call.1} parent=1 // pred_fallthru
      _
    // Predicated region
    $region6: #{tpu_custom_call.1} parent=1 // pred_check
      _
    $region7: #{tpu_custom_call.1} parent=1 // pred_check_branch
      %26 = sbr.rel (0) target = $region9
    $region8: #{tpu_custom_call.1} parent=1 // pred_region
      %s28 = ssub.s32 2048, 2048
      %29 = vsyncadd [#allocation6], %s28
      %s30 = sshll.u32 [#allocation5], 4
      %s31 = int_to_ptr.vmem [resolvable:$true] %s30
      %36 = dma.hbm_to_vmem [thread:$0]  %s1, 2048, %s31, [#allocation6], 128, 128, 8
    $region9: #{tpu_custom_call.1} parent=1 // pred_fallthru
      _
    // Predicated region
    $region10: #{tpu_custom_call.1} parent=1 // pred_check
      _
    $region11: #{tpu_custom_call.1} parent=1 // pred_check_branch
      %38 = sbr.rel (0) target = $region13
    $region12: #{tpu_custom_call.1} parent=1 // pred_region
      %s40 = ssub.s32 2048, 2048
      %41 = vsyncadd [#allocation6], %s40
      %s42 = sshll.u32 [#allocation7], 4
      %s43 = int_to_ptr.vmem [resolvable:$true] %s42
      %48 = dma.hbm_to_vmem [thread:$0]  %s2, 2048, %s43, [#allocation6], 128, 128, 8
    $region13: #{tpu_custom_call.1} parent=1 // pred_fallthru
      _
    // Predicated region
    $region14: #{tpu_custom_call.1} parent=1 // pred_check
      _
    $region15: #{tpu_custom_call.1} parent=1 // pred_check_branch
      %50 = sbr.rel (0) target = $region17
    $region16: #{tpu_custom_call.1} parent=1 // pred_region
      %s52 = ssub.s32 2048, 2048
      %53 = vsyncadd [#allocation9], %s52
      %s54 = sshll.u32 [#allocation8], 4
      %s55 = int_to_ptr.vmem [resolvable:$true] %s54
      %60 = dma.hbm_to_vmem [thread:$0]  %s3, 2048, %s55, [#allocation9], 128, 128, 8
    $region17: #{tpu_custom_call.1} parent=1 // pred_fallthru
      _
    // Predicated region
    $region18: #{tpu_custom_call.1} parent=1 // pred_check
      _
    $region19: #{tpu_custom_call.1} parent=1 // pred_check_branch
      %62 = sbr.rel (0) target = $region21
    $region20: #{tpu_custom_call.1} parent=1 // pred_region
      _
    $region21: #{tpu_custom_call.1} parent=1 // pred_fallthru
      _
    // Predicated region
    $region22: #{tpu_custom_call.1} parent=1 // pred_check
      _
    $region23: #{tpu_custom_call.1} parent=1 // pred_check_branch
      %64 = sbr.rel (0) target = $region25
    $region24: #{tpu_custom_call.1} parent=1 // pred_region
      _
    $region25: #{tpu_custom_call.1} parent=1 // pred_fallthru
      _
    // Predicated region
    $region26: #{tpu_custom_call.1} parent=1 // pred_check
      _
    $region27: #{tpu_custom_call.1} parent=1 // pred_check_branch
      %66 = sbr.rel (0) target = $region29
    $region28: #{tpu_custom_call.1} parent=1 // pred_region
      %67 = dma.done [#allocation3], 128
    $region29: #{tpu_custom_call.1} parent=1 // pred_fallthru
      _
    // Predicated region
    $region30: #{tpu_custom_call.1} parent=1 // pred_check
      _
    $region31: #{tpu_custom_call.1} parent=1 // pred_check_branch
      %69 = sbr.rel (0) target = $region33
    $region32: #{tpu_custom_call.1} parent=1 // pred_region
      %70 = dma.done [#allocation6], 2048
    $region33: #{tpu_custom_call.1} parent=1 // pred_fallthru
      _
    // Predicated region
    $region34: #{tpu_custom_call.1} parent=1 // pred_check
      _
    $region35: #{tpu_custom_call.1} parent=1 // pred_check_branch
      %72 = sbr.rel (0) target = $region37
    $region36: #{tpu_custom_call.1} parent=1 // pred_region
      %73 = dma.done [#allocation6], 2048
    $region37: #{tpu_custom_call.1} parent=1 // pred_fallthru
      _
    // Predicated region
    $region38: #{tpu_custom_call.1} parent=1 // pred_check
      _
    $region39: #{tpu_custom_call.1} parent=1 // pred_check_branch
      %75 = sbr.rel (0) target = $region41
    $region40: #{tpu_custom_call.1} parent=1 // pred_region
      %76 = dma.done [#allocation9], 2048
    $region41: #{tpu_custom_call.1} parent=1 // pred_fallthru
      _
    %v77 = vld [vmem:[%s4] sm:$0x1]
    %v78 = vld [vmem:[%s4 + $0x1] sm:$0x1]
    %v79 = vld [vmem:[%s5] sm:$0x1]
    %v80 = vld [vmem:[%s5 + $0x1] sm:$0x1]
    %v81 = vld [vmem:[%s5 + $0x2] sm:$0x1]
    %v82 = vld [vmem:[#allocation2] sm:$0xff]
    %v83 = vld [vmem:[#allocation5] sm:$0xff]
    %v84 = vld [vmem:[#allocation5 + $0x8] sm:$0xff]
    %v85 = vld [vmem:[#allocation5 + $0x10] sm:$0xff]
    %v86 = vld [vmem:[#allocation5 + $0x18] sm:$0xff]
    %v87 = vld [vmem:[#allocation5 + $0x20] sm:$0xff]
    %v88 = vld [vmem:[#allocation5 + $0x28] sm:$0xff]
    %v89 = vld [vmem:[#allocation5 + $0x30] sm:$0xff]
    %v90 = vld [vmem:[#allocation5 + $0x38] sm:$0xff]
    %v91 = vld [vmem:[#allocation5 + $0x40] sm:$0xff]
    %v92 = vld [vmem:[#allocation5 + $0x48] sm:$0xff]
    %v93 = vld [vmem:[#allocation5 + $0x50] sm:$0xff]
    %v94 = vld [vmem:[#allocation5 + $0x58] sm:$0xff]
    %v95 = vld [vmem:[#allocation5 + $0x60] sm:$0xff]
    %v96 = vld [vmem:[#allocation5 + $0x68] sm:$0xff]
    %v97 = vld [vmem:[#allocation5 + $0x70] sm:$0xff]
    %v98 = vld [vmem:[#allocation5 + $0x78] sm:$0xff]
    %v99 = vlaneseq
    %v100 = vshrl.u32 %v99, 7
    %v101 = vsub.s32 0, %v100
    %v102 = vrot.slane %v77, %v101
    %103 = vmatprep.subr.mxu0 0.0
    %104 = vmatpush1.msra.mxu0 %v98
    %105 = vmatprep.subr.mxu0 0.0
    %106 = vmatpush1.msra.mxu0 %v97
    %107 = vmatprep.subr.mxu0 0.0
    %108 = vmatpush1.msra.mxu0 %v96
    %109 = vmatprep.subr.mxu0 0.0
    %110 = vmatpush1.msra.mxu0 %v95
    %111 = vmatprep.subr.mxu0 0.0
    %112 = vmatpush1.msra.mxu0 %v94
    %113 = vmatprep.subr.mxu0 0.0
    %114 = vmatpush1.msra.mxu0 %v93
    %115 = vmatprep.subr.mxu0 0.0
    %116 = vmatpush1.msra.mxu0 %v92
    %117 = vmatprep.subr.mxu0 0.0
    %118 = vmatpush1.msra.mxu0 %v91
    %119 = vmatprep.subr.mxu0 0.0
    %120 = vmatpush1.msra.mxu0 %v90
    %121 = vmatprep.subr.mxu0 0.0
    %122 = vmatpush1.msra.mxu0 %v89
    %123 = vmatprep.subr.mxu0 0.0
    %124 = vmatpush1.msra.mxu0 %v88
    %125 = vmatprep.subr.mxu0 0.0
    %126 = vmatpush1.msra.mxu0 %v87
    %127 = vmatprep.subr.mxu0 0.0
    %128 = vmatpush1.msra.mxu0 %v86
    %129 = vmatprep.subr.mxu0 0.0
    %130 = vmatpush1.msra.mxu0 %v85
    %131 = vmatprep.subr.mxu0 0.0
    %132 = vmatpush1.msra.mxu0 %v84
    %133 = vmatprep.subr.mxu0 0.0
    %134 = vmatpush1.msra.mxu0 %v83
    %135 = vmatprep.subr.mxu0 0.0
    %136 = vmatpush2.msra.mxu0 0.0
    %137 = vmatprep.subr.mxu0 0.0
    %138 = vmatpush2.msra.mxu0 0.0
    %139 = vmatprep.subr.mxu0 0.0
    %140 = vmatpush2.msra.mxu0 0.0
    %141 = vmatprep.subr.mxu0 0.0
    %142 = vmatpush2.msra.mxu0 0.0
    %143 = vmatprep.subr.mxu0 0.0
    %144 = vmatpush2.msra.mxu0 0.0
    %145 = vmatprep.subr.mxu0 0.0
    %146 = vmatpush2.msra.mxu0 0.0
    %147 = vmatprep.subr.mxu0 0.0
    %148 = vmatpush2.msra.mxu0 0.0
    %149 = vmatprep.subr.mxu0 0.0
    %150 = vmatpush2.msra.mxu0 0.0
    %151 = vmatprep.subr.mxu0 0.0
    %152 = vmatpush2.msra.mxu0 0.0
    %153 = vmatprep.subr.mxu0 0.0
    %154 = vmatpush2.msra.mxu0 0.0
    %155 = vmatprep.subr.mxu0 0.0
    %156 = vmatpush2.msra.mxu0 0.0
    %157 = vmatprep.subr.mxu0 0.0
    %158 = vmatpush2.msra.mxu0 0.0
    %159 = vmatprep.subr.mxu0 0.0
    %160 = vmatpush2.msra.mxu0 0.0
    %161 = vmatprep.subr.mxu0 0.0
    %162 = vmatpush2.msra.mxu0 0.0
    %163 = vmatprep.subr.mxu0 0.0
    %164 = vmatpush2.msra.mxu0 0.0
    %165 = vmatprep.subr.mxu0 0.0
    %166 = vmatpush2.msra.mxu0 0.0
    %167 = vmatprep.mubr.f32.mxu0 0.0
    %168 = vmatmul.mubr.f32.gmra.mxu0 %v82
    %v169 = vpop.f32.mrf.mxu0
    %v170 = vadd.f32 %v102, %v169
    %v171 = vpop.f32.mrf.mxu0
    %172 = vdwg.mxu0
    %v173 = vmax.f32 %v170, 0.0
    %v174 = vld [vmem:[#allocation7] sm:$0xff]
    %v175 = vld [vmem:[#allocation7 + $0x8] sm:$0xff]
    %v176 = vld [vmem:[#allocation7 + $0x10] sm:$0xff]
    %v177 = vld [vmem:[#allocation7 + $0x18] sm:$0xff]
    %v178 = vld [vmem:[#allocation7 + $0x20] sm:$0xff]
    %v179 = vld [vmem:[#allocation7 + $0x28] sm:$0xff]
    %v180 = vld [vmem:[#allocation7 + $0x30] sm:$0xff]
    %v181 = vld [vmem:[#allocation7 + $0x38] sm:$0xff]
    %v182 = vld [vmem:[#allocation7 + $0x40] sm:$0xff]
    %v183 = vld [vmem:[#allocation7 + $0x48] sm:$0xff]
    %v184 = vld [vmem:[#allocation7 + $0x50] sm:$0xff]
    %v185 = vld [vmem:[#allocation7 + $0x58] sm:$0xff]
    %v186 = vld [vmem:[#allocation7 + $0x60] sm:$0xff]
    %v187 = vld [vmem:[#allocation7 + $0x68] sm:$0xff]
    %v188 = vld [vmem:[#allocation7 + $0x70] sm:$0xff]
    %v189 = vld [vmem:[#allocation7 + $0x78] sm:$0xff]
    %v190 = vlaneseq
    %v191 = vshrl.u32 %v190, 7
    %v192 = vsub.s32 0, %v191
    %v193 = vrot.slane %v78, %v192
    %194 = vmatprep.subr.mxu0 0.0
    %195 = vmatpush1.msra.mxu0 %v189
    %196 = vmatprep.subr.mxu0 0.0
    %197 = vmatpush1.msra.mxu0 %v188
    %198 = vmatprep.subr.mxu0 0.0
    %199 = vmatpush1.msra.mxu0 %v187
    %200 = vmatprep.subr.mxu0 0.0
    %201 = vmatpush1.msra.mxu0 %v186
    %202 = vmatprep.subr.mxu0 0.0
    %203 = vmatpush1.msra.mxu0 %v185
    %204 = vmatprep.subr.mxu0 0.0
    %205 = vmatpush1.msra.mxu0 %v184
    %206 = vmatprep.subr.mxu0 0.0
    %207 = vmatpush1.msra.mxu0 %v183
    %208 = vmatprep.subr.mxu0 0.0
    %209 = vmatpush1.msra.mxu0 %v182
    %210 = vmatprep.subr.mxu0 0.0
    %211 = vmatpush1.msra.mxu0 %v181
    %212 = vmatprep.subr.mxu0 0.0
    %213 = vmatpush1.msra.mxu0 %v180
    %214 = vmatprep.subr.mxu0 0.0
    %215 = vmatpush1.msra.mxu0 %v179
    %216 = vmatprep.subr.mxu0 0.0
    %217 = vmatpush1.msra.mxu0 %v178
    %218 = vmatprep.subr.mxu0 0.0
    %219 = vmatpush1.msra.mxu0 %v177
    %220 = vmatprep.subr.mxu0 0.0
    %221 = vmatpush1.msra.mxu0 %v176
    %222 = vmatprep.subr.mxu0 0.0
    %223 = vmatpush1.msra.mxu0 %v175
    %224 = vmatprep.subr.mxu0 0.0
    %225 = vmatpush1.msra.mxu0 %v174
    %226 = vmatprep.subr.mxu0 0.0
    %227 = vmatpush2.msra.mxu0 0.0
    %228 = vmatprep.subr.mxu0 0.0
    %229 = vmatpush2.msra.mxu0 0.0
    %230 = vmatprep.subr.mxu0 0.0
    %231 = vmatpush2.msra.mxu0 0.0
    %232 = vmatprep.subr.mxu0 0.0
    %233 = vmatpush2.msra.mxu0 0.0
    %234 = vmatprep.subr.mxu0 0.0
    %235 = vmatpush2.msra.mxu0 0.0
    %236 = vmatprep.subr.mxu0 0.0
    %237 = vmatpush2.msra.mxu0 0.0
    %238 = vmatprep.subr.mxu0 0.0
    %239 = vmatpush2.msra.mxu0 0.0
    %240 = vmatprep.subr.mxu0 0.0
    %241 = vmatpush2.msra.mxu0 0.0
    %242 = vmatprep.subr.mxu0 0.0
    %243 = vmatpush2.msra.mxu0 0.0
    %244 = vmatprep.subr.mxu0 0.0
    %245 = vmatpush2.msra.mxu0 0.0
    %246 = vmatprep.subr.mxu0 0.0
    %247 = vmatpush2.msra.mxu0 0.0
    %248 = vmatprep.subr.mxu0 0.0
    %249 = vmatpush2.msra.mxu0 0.0
    %250 = vmatprep.subr.mxu0 0.0
    %251 = vmatpush2.msra.mxu0 0.0
    %252 = vmatprep.subr.mxu0 0.0
    %253 = vmatpush2.msra.mxu0 0.0
    %254 = vmatprep.subr.mxu0 0.0
    %255 = vmatpush2.msra.mxu0 0.0
    %256 = vmatprep.subr.mxu0 0.0
    %257 = vmatpush2.msra.mxu0 0.0
    %258 = vmatprep.mubr.f32.mxu0 0.0
    %259 = vmatmul.mubr.f32.gmra.mxu0 %v173
    %v260 = vpop.f32.mrf.mxu0
    %v261 = vadd.f32 %v193, %v260
    %v262 = vpop.f32.mrf.mxu0
    %263 = vdwg.mxu0
    %v264 = vmax.f32 %v261, 0.0
    %v265 = vld [vmem:[#allocation8] sm:$0xff]
    %v266 = vld [vmem:[#allocation8 + $0x8] sm:$0xff]
    %v267 = vld [vmem:[#allocation8 + $0x10] sm:$0xff]
    %v268 = vld [vmem:[#allocation8 + $0x18] sm:$0xff]
    %v269 = vld [vmem:[#allocation8 + $0x20] sm:$0xff]
    %v270 = vld [vmem:[#allocation8 + $0x28] sm:$0xff]
    %v271 = vld [vmem:[#allocation8 + $0x30] sm:$0xff]
    %v272 = vld [vmem:[#allocation8 + $0x38] sm:$0xff]
    %v273 = vld [vmem:[#allocation8 + $0x40] sm:$0xff]
    %v274 = vld [vmem:[#allocation8 + $0x48] sm:$0xff]
    %v275 = vld [vmem:[#allocation8 + $0x50] sm:$0xff]
    %v276 = vld [vmem:[#allocation8 + $0x58] sm:$0xff]
    %v277 = vld [vmem:[#allocation8 + $0x60] sm:$0xff]
    %v278 = vld [vmem:[#allocation8 + $0x68] sm:$0xff]
    %v279 = vld [vmem:[#allocation8 + $0x70] sm:$0xff]
    %v280 = vld [vmem:[#allocation8 + $0x78] sm:$0xff]
    %v281 = vlaneseq
    %v282 = vshrl.u32 %v281, 7
    %v283 = vsub.s32 0, %v282
    %v284 = vrot.slane %v79, %v283
    %285 = vmatprep.subr.mxu0 0.0
    %286 = vmatpush1.msra.mxu0 %v280
    %287 = vmatprep.subr.mxu0 0.0
    %288 = vmatpush1.msra.mxu0 %v279
    %289 = vmatprep.subr.mxu0 0.0
    %290 = vmatpush1.msra.mxu0 %v278
    %291 = vmatprep.subr.mxu0 0.0
    %292 = vmatpush1.msra.mxu0 %v277
    %293 = vmatprep.subr.mxu0 0.0
    %294 = vmatpush1.msra.mxu0 %v276
    %295 = vmatprep.subr.mxu0 0.0
    %296 = vmatpush1.msra.mxu0 %v275
    %297 = vmatprep.subr.mxu0 0.0
    %298 = vmatpush1.msra.mxu0 %v274
    %299 = vmatprep.subr.mxu0 0.0
    %300 = vmatpush1.msra.mxu0 %v273
    %301 = vmatprep.subr.mxu0 0.0
    %302 = vmatpush1.msra.mxu0 %v272
    %303 = vmatprep.subr.mxu0 0.0
    %304 = vmatpush1.msra.mxu0 %v271
    %305 = vmatprep.subr.mxu0 0.0
    %306 = vmatpush1.msra.mxu0 %v270
    %307 = vmatprep.subr.mxu0 0.0
    %308 = vmatpush1.msra.mxu0 %v269
    %309 = vmatprep.subr.mxu0 0.0
    %310 = vmatpush1.msra.mxu0 %v268
    %311 = vmatprep.subr.mxu0 0.0
    %312 = vmatpush1.msra.mxu0 %v267
    %313 = vmatprep.subr.mxu0 0.0
    %314 = vmatpush1.msra.mxu0 %v266
    %315 = vmatprep.subr.mxu0 0.0
    %316 = vmatpush1.msra.mxu0 %v265
    %317 = vmatprep.subr.mxu0 0.0
    %318 = vmatpush2.msra.mxu0 0.0
    %319 = vmatprep.subr.mxu0 0.0
    %320 = vmatpush2.msra.mxu0 0.0
    %321 = vmatprep.subr.mxu0 0.0
    %322 = vmatpush2.msra.mxu0 0.0
    %323 = vmatprep.subr.mxu0 0.0
    %324 = vmatpush2.msra.mxu0 0.0
    %325 = vmatprep.subr.mxu0 0.0
    %326 = vmatpush2.msra.mxu0 0.0
    %327 = vmatprep.subr.mxu0 0.0
    %328 = vmatpush2.msra.mxu0 0.0
    %329 = vmatprep.subr.mxu0 0.0
    %330 = vmatpush2.msra.mxu0 0.0
    %331 = vmatprep.subr.mxu0 0.0
    %332 = vmatpush2.msra.mxu0 0.0
    %333 = vmatprep.subr.mxu0 0.0
    %334 = vmatpush2.msra.mxu0 0.0
    %335 = vmatprep.subr.mxu0 0.0
    %336 = vmatpush2.msra.mxu0 0.0
    %337 = vmatprep.subr.mxu0 0.0
    %338 = vmatpush2.msra.mxu0 0.0
    %339 = vmatprep.subr.mxu0 0.0
    %340 = vmatpush2.msra.mxu0 0.0
    %341 = vmatprep.subr.mxu0 0.0
    %342 = vmatpush2.msra.mxu0 0.0
    %343 = vmatprep.subr.mxu0 0.0
    %344 = vmatpush2.msra.mxu0 0.0
    %345 = vmatprep.subr.mxu0 0.0
    %346 = vmatpush2.msra.mxu0 0.0
    %347 = vmatprep.subr.mxu0 0.0
    %348 = vmatpush2.msra.mxu0 0.0
    %349 = vmatprep.mubr.f32.mxu0 0.0
    %350 = vmatmul.mubr.f32.gmra.mxu0 %v264
    %v351 = vpop.f32.mrf.mxu0
    %v352 = vadd.f32 %v284, %v351
    %v353 = vpop.f32.mrf.mxu0
    %354 = vdwg.mxu0
    %355 = vadd.xlane.f32.xlu0 %v352
    %v356 = vpop.xlane.xlu0 %355
    %v357 = vmul.f32 %v356, 0.0625
    %v358 = vsub.f32 %v352, %v357
    %v359 = vlaneseq
    %v360 = vand.u32 %v359, 127
    %vm361 = vcmp.lt.s32.totalorder %v360, 16
    %v362 = vsel %vm361, %v358, 0.0
    %v363 = vmul.f32 %v362, %v362
    %364 = vadd.xlane.f32.xlu0 %v363
    %v365 = vpop.xlane.xlu0 %364
    %v366 = vmul.f32 %v365, 0.0625
    %v367 = vadd.f32 %v366, 1e-05
    %v368 = vrsqrt.pop %v367
    %v369 = vmul.f32 %v362, %v368
    %v370 = vlaneseq
    %v371 = vshrl.u32 %v370, 7
    %v372 = vsub.s32 0, %v371
    %v373 = vrot.slane %v80, %v372
    %v374 = vmul.f32 %v369, %v373
    %v375 = vlaneseq
    %v376 = vshrl.u32 %v375, 7
    %v377 = vsub.s32 0, %v376
    %v378 = vrot.slane %v81, %v377
    %v379 = vadd.f32 %v374, %v378
    %380 = vst [vmem:[#allocation10] sm:$0xff] %v379
    // Predicated region
    $region42: #{tpu_custom_call.1} parent=1 // pred_check
      _
    $region43: #{tpu_custom_call.1} parent=1 // pred_check_branch
      %382 = sbr.rel (0) target = $region45
    $region44: #{tpu_custom_call.1} parent=1 // pred_region
      %s384 = ssub.s32 128, 128
      %385 = vsyncadd [#allocation4], %s384
      %s387 = sshll.u32 [#allocation10], 4
      %s388 = int_to_ptr.vmem [resolvable:$true] %s387
      %390 = dma.vmem_to_hbm [thread:$0]  %s388, 128, %s6, [#allocation4]
    $region45: #{tpu_custom_call.1} parent=1 // pred_fallthru
      _
    // Predicated region
    $region46: #{tpu_custom_call.1} parent=1 // pred_check
      _
    $region47: #{tpu_custom_call.1} parent=1 // pred_check_branch
      %392 = sbr.rel (0) target = $region49
    $region48: #{tpu_custom_call.1} parent=1 // pred_region
      %393 = dma.done [#allocation4], 128
    $region49: #{tpu_custom_call.1} parent=1 // pred_fallthru
      _
    %394 = vsyncpa [#allocation3], 1
    %395 = vsyncpa [#allocation6], 1
    %396 = vsyncpa [#allocation9], 1
    %397 = vsyncpa [#allocation4], 1

</llo_original>
